<compile_context>
chip_gen: v5e
topology: v5e:2x2
jax: 0.10.0
libtpu: 0.0.40
codegen_flags: <defaults>
</compile_context>

<pallas_src>
import functools

import jax
import jax.numpy as jnp
from jax.experimental import pallas as pl
from jax.experimental.pallas import tpu as pltpu

_LANES = 128


def _project3d_kernel(p_ref, pts_ref, o_ref, *, eps):
    # p_ref:   (B, 12) f32 in SMEM — P rows 0/1 pre-scaled by 2/(W-1), 2/(H-1)
    # pts_ref: (4, R, 128) VMEM — channel-major homogeneous points tile
    # o_ref:   (2, R, 128) VMEM — normalized pixel coords tile
    b = pl.program_id(0)

    px = pts_ref[0]
    py = pts_ref[1]
    pz = pts_ref[2]
    pw = pts_ref[3]

    def cam_row(i):
        # cam_i = sum_k P[i, k] * pts[k]  (broadcast multiply-adds on the VPU)
        return (p_ref[b, 4 * i + 0] * px
                + p_ref[b, 4 * i + 1] * py
                + p_ref[b, 4 * i + 2] * pz
                + p_ref[b, 4 * i + 3] * pw)

    cam0 = cam_row(0)
    cam1 = cam_row(1)
    cam2 = cam_row(2)

    # Exact reciprocal (approx=True would be ~12-bit and may exceed 1e-5 tol).
    inv = pl.reciprocal(cam2 + eps)

    o_ref[0] = (cam0 * inv - 1.0).astype(o_ref.dtype)
    o_ref[1] = (cam1 * inv - 1.0).astype(o_ref.dtype)


def _pick_rows_per_step(total_rows, max_rows):
    """Largest multiple-of-8 divisor of total_rows that is <= max_rows, or
    total_rows itself if it already fits / no such divisor exists (block dims
    must be multiples of 8 or cover the full axis)."""
    if total_rows <= max_rows:
        return total_rows
    best = None
    for r in range(8, max_rows + 1, 8):
        if total_rows % r == 0:
            best = r
    return best if best is not None else total_rows


def project3d(points, K, T, *, batch_size, height, width, eps=1e-07,
              max_pixels_per_step=32768):
    """points: (B, 4, H*W), K: (B, 4, 4), T: (B, 4, 4) -> (B, H, W, 2)."""
    B = batch_size
    N = height * width
    assert points.shape == (B, 4, N)
    assert K.shape == (B, 4, 4) and T.shape == (B, 4, 4)

    # Hoist P = (K @ T)[:, :3, :] (B*64 flops, free in XLA) and fold the pixel
    # normalization into rows 0/1:
    #   out_x = (2/(W-1)) * cam0 / (cam2 + eps) - 1
    #   out_y = (2/(H-1)) * cam1 / (cam2 + eps) - 1
    P = jnp.matmul(K.astype(jnp.float32), T.astype(jnp.float32))[:, :3, :]
    scale = jnp.array([2.0 / (width - 1.0), 2.0 / (height - 1.0), 1.0],
                      jnp.float32)
    P_flat = (P * scale[None, :, None]).reshape(B, 12)

    # Re-layout pixel axis as dense (sublane, lane) = (N/128, 128) planes.
    n_pad = ((N + _LANES - 1) // _LANES) * _LANES
    pts = points
    if n_pad != N:
        # Zero padding: cam = 0 there, denom = eps, output finite; sliced off.
        pts = jnp.pad(points, ((0, 0), (0, 0), (0, n_pad - N)))
    total_rows = n_pad // _LANES
    pts = pts.reshape(B, 4, total_rows, _LANES)

    rows = _pick_rows_per_step(total_rows,
                               max(1, max_pixels_per_step // _LANES))

    kernel = functools.partial(_project3d_kernel, eps=eps)

    out = pl.pallas_call(
        kernel,
        out_shape=jax.ShapeDtypeStruct((B, 2, total_rows, _LANES), points.dtype),
        grid_spec=pltpu.PrefetchScalarGridSpec(
            num_scalar_prefetch=0,
            grid=(B, total_rows // rows),
            in_specs=[
                # Precomputed, normalization-folded P: whole (B, 12) in SMEM.
                pl.BlockSpec(memory_space=pltpu.MemorySpace.SMEM),
                # Points: dense (4, rows, 128) block per step.
                pl.BlockSpec((None, 4, rows, _LANES), lambda b, n: (b, 0, n, 0)),
            ],
            out_specs=pl.BlockSpec((None, 2, rows, _LANES),
                                   lambda b, n: (b, 0, n, 0)),
        ),
        compiler_params=pltpu.CompilerParams(
            dimension_semantics=("parallel", "parallel")
        ),
    )(P_flat, pts)

    # Glue to match the PyTorch view+permute: (B,2,rows,128) -> (B,2,H,W)
    # -> (B,H,W,2).  Kept channel-major inside the kernel (lane-dense stores);
    # this transpose is one extra plain-XLA pass kept only to match the
    # reference output layout.
    pix = out.reshape(B, 2, n_pad)[:, :, :N].reshape(B, 2, height, width)
    pix = jnp.transpose(pix, (0, 2, 3, 1))
    return pix


def _reference(points, K, T, *, batch_size, height, width, eps=1e-07):
    P = jnp.matmul(K, T)[:, :3, :]
    cam = jnp.matmul(P, points)
    pix = cam[:, :2, :] / (cam[:, 2:3, :] + eps)
    pix = pix.reshape(batch_size, 2, height, width)
    pix = jnp.transpose(pix, (0, 2, 3, 1))
    pix = pix.at[..., 0].divide(width - 1)
    pix = pix.at[..., 1].divide(height - 1)
    return (pix - 0.5) * 2


if __name__ == "__main__":
    B, H, W = 2, 16, 16
    N = H * W
    key = jax.random.PRNGKey(0)
    k1, k2, k3 = jax.random.split(key, 3)

    # Homogeneous 3D points (last row = 1), kept in front of the camera so the
    # projective divide is well conditioned.
    xyz = jax.random.uniform(k1, (B, 3, N), jnp.float32, minval=0.5, maxval=1.5)
    points = jnp.concatenate([xyz, jnp.ones((B, 1, N), jnp.float32)], axis=1)

    # Intrinsics K and pose T: identity plus a small deterministic perturbation.
    eye = jnp.broadcast_to(jnp.eye(4, dtype=jnp.float32), (B, 4, 4))
    K = eye + 0.05 * jax.random.normal(k2, (B, 4, 4), jnp.float32)
    T = eye + 0.05 * jax.random.normal(k3, (B, 4, 4), jnp.float32)

    out = project3d(points, K, T, batch_size=B, height=H, width=W)
    out = jax.block_until_ready(out)

    ref = _reference(points, K, T, batch_size=B, height=H, width=W)
    assert out.shape == (B, H, W, 2)
    assert jnp.allclose(out, ref, rtol=1e-5, atol=1e-5), "mismatch vs reference"

    print("KERNEL_OK")
</pallas_src>

<mosaic_0001>
module attributes {stable_mosaic.version = 11 : i64} {
  func.func @_project3d_kernel(%arg0: i32, %arg1: i32, %arg2: memref<2x12xf32, #tpu.memory_space<smem>>, %arg3: memref<1x4x2x128xf32, #tpu.memory_space<vmem>>, %arg4: memref<1x2x2x128xf32, #tpu.memory_space<vmem>>) attributes {dimension_semantics = [#tpu.dimension_semantics<parallel>, #tpu.dimension_semantics<parallel>], iteration_bounds = array<i64: 2, 1>, scalar_prefetch = 0 : i64, scratch_operands = 0 : i64, tpu.core_type = #tpu.core_type<tc>, window_params = [{transform_indices = @transform_0, window_bounds = array<i64: 2, 12>}, {transform_indices = @transform_1, window_bounds = array<i64: 1, 4, 2, 128>}, {transform_indices = @transform_2, window_bounds = array<i64: 1, 2, 2, 128>}]} {
    %c0 = arith.constant 0 : index
    %c0_0 = arith.constant 0 : index
    %c0_1 = arith.constant 0 : index
    %c0_2 = arith.constant 0 : index
    %0 = vector.load %arg3[%c0, %c0_0, %c0_1, %c0_2] : memref<1x4x2x128xf32, #tpu.memory_space<vmem>>, vector<1x1x2x128xf32>
    %1 = vector.shape_cast %0 : vector<1x1x2x128xf32> to vector<2x128xf32>
    %c0_3 = arith.constant 0 : index
    %c1 = arith.constant 1 : index
    %c0_4 = arith.constant 0 : index
    %c0_5 = arith.constant 0 : index
    %2 = vector.load %arg3[%c0_3, %c1, %c0_4, %c0_5] : memref<1x4x2x128xf32, #tpu.memory_space<vmem>>, vector<1x1x2x128xf32>
    %3 = vector.shape_cast %2 : vector<1x1x2x128xf32> to vector<2x128xf32>
    %c0_6 = arith.constant 0 : index
    %c2 = arith.constant 2 : index
    %c0_7 = arith.constant 0 : index
    %c0_8 = arith.constant 0 : index
    %4 = vector.load %arg3[%c0_6, %c2, %c0_7, %c0_8] : memref<1x4x2x128xf32, #tpu.memory_space<vmem>>, vector<1x1x2x128xf32>
    %5 = vector.shape_cast %4 : vector<1x1x2x128xf32> to vector<2x128xf32>
    %c0_9 = arith.constant 0 : index
    %c3 = arith.constant 3 : index
    %c0_10 = arith.constant 0 : index
    %c0_11 = arith.constant 0 : index
    %6 = vector.load %arg3[%c0_9, %c3, %c0_10, %c0_11] : memref<1x4x2x128xf32, #tpu.memory_space<vmem>>, vector<1x1x2x128xf32>
    %7 = vector.shape_cast %6 : vector<1x1x2x128xf32> to vector<2x128xf32>
    %8 = arith.index_cast %arg0 : i32 to index
    %c0_12 = arith.constant 0 : index
    %9 = memref.load %arg2[%8, %c0_12] : memref<2x12xf32, #tpu.memory_space<smem>>
    %10 = vector.broadcast %9 : f32 to vector<2x128xf32>
    %11 = arith.mulf %10, %1 : vector<2x128xf32>
    %12 = arith.index_cast %arg0 : i32 to index
    %c1_13 = arith.constant 1 : index
    %13 = memref.load %arg2[%12, %c1_13] : memref<2x12xf32, #tpu.memory_space<smem>>
    %14 = vector.broadcast %13 : f32 to vector<2x128xf32>
    %15 = arith.mulf %14, %3 : vector<2x128xf32>
    %16 = arith.addf %11, %15 : vector<2x128xf32>
    %17 = arith.index_cast %arg0 : i32 to index
    %c2_14 = arith.constant 2 : index
    %18 = memref.load %arg2[%17, %c2_14] : memref<2x12xf32, #tpu.memory_space<smem>>
    %19 = vector.broadcast %18 : f32 to vector<2x128xf32>
    %20 = arith.mulf %19, %5 : vector<2x128xf32>
    %21 = arith.addf %16, %20 : vector<2x128xf32>
    %22 = arith.index_cast %arg0 : i32 to index
    %c3_15 = arith.constant 3 : index
    %23 = memref.load %arg2[%22, %c3_15] : memref<2x12xf32, #tpu.memory_space<smem>>
    %24 = vector.broadcast %23 : f32 to vector<2x128xf32>
    %25 = arith.mulf %24, %7 : vector<2x128xf32>
    %26 = arith.addf %21, %25 : vector<2x128xf32>
    %27 = arith.index_cast %arg0 : i32 to index
    %c4 = arith.constant 4 : index
    %28 = memref.load %arg2[%27, %c4] : memref<2x12xf32, #tpu.memory_space<smem>>
    %29 = vector.broadcast %28 : f32 to vector<2x128xf32>
    %30 = arith.mulf %29, %1 : vector<2x128xf32>
    %31 = arith.index_cast %arg0 : i32 to index
    %c5 = arith.constant 5 : index
    %32 = memref.load %arg2[%31, %c5] : memref<2x12xf32, #tpu.memory_space<smem>>
    %33 = vector.broadcast %32 : f32 to vector<2x128xf32>
    %34 = arith.mulf %33, %3 : vector<2x128xf32>
    %35 = arith.addf %30, %34 : vector<2x128xf32>
    %36 = arith.index_cast %arg0 : i32 to index
    %c6 = arith.constant 6 : index
    %37 = memref.load %arg2[%36, %c6] : memref<2x12xf32, #tpu.memory_space<smem>>
    %38 = vector.broadcast %37 : f32 to vector<2x128xf32>
    %39 = arith.mulf %38, %5 : vector<2x128xf32>
    %40 = arith.addf %35, %39 : vector<2x128xf32>
    %41 = arith.index_cast %arg0 : i32 to index
    %c7 = arith.constant 7 : index
    %42 = memref.load %arg2[%41, %c7] : memref<2x12xf32, #tpu.memory_space<smem>>
    %43 = vector.broadcast %42 : f32 to vector<2x128xf32>
    %44 = arith.mulf %43, %7 : vector<2x128xf32>
    %45 = arith.addf %40, %44 : vector<2x128xf32>
    %46 = arith.index_cast %arg0 : i32 to index
    %c8 = arith.constant 8 : index
    %47 = memref.load %arg2[%46, %c8] : memref<2x12xf32, #tpu.memory_space<smem>>
    %48 = vector.broadcast %47 : f32 to vector<2x128xf32>
    %49 = arith.mulf %48, %1 : vector<2x128xf32>
    %50 = arith.index_cast %arg0 : i32 to index
    %c9 = arith.constant 9 : index
    %51 = memref.load %arg2[%50, %c9] : memref<2x12xf32, #tpu.memory_space<smem>>
    %52 = vector.broadcast %51 : f32 to vector<2x128xf32>
    %53 = arith.mulf %52, %3 : vector<2x128xf32>
    %54 = arith.addf %49, %53 : vector<2x128xf32>
    %55 = arith.index_cast %arg0 : i32 to index
    %c10 = arith.constant 10 : index
    %56 = memref.load %arg2[%55, %c10] : memref<2x12xf32, #tpu.memory_space<smem>>
    %57 = vector.broadcast %56 : f32 to vector<2x128xf32>
    %58 = arith.mulf %57, %5 : vector<2x128xf32>
    %59 = arith.addf %54, %58 : vector<2x128xf32>
    %60 = arith.index_cast %arg0 : i32 to index
    %c11 = arith.constant 11 : index
    %61 = memref.load %arg2[%60, %c11] : memref<2x12xf32, #tpu.memory_space<smem>>
    %62 = vector.broadcast %61 : f32 to vector<2x128xf32>
    %63 = arith.mulf %62, %7 : vector<2x128xf32>
    %64 = arith.addf %59, %63 : vector<2x128xf32>
    %cst = arith.constant 1.000000e-07 : f32
    %65 = vector.broadcast %cst : f32 to vector<2x128xf32>
    %66 = arith.addf %64, %65 : vector<2x128xf32>
    %67 = tpu.reciprocal %66 : vector<2x128xf32> -> vector<2x128xf32>
    %68 = arith.mulf %26, %67 : vector<2x128xf32>
    %cst_16 = arith.constant 1.000000e+00 : f32
    %69 = vector.broadcast %cst_16 : f32 to vector<2x128xf32>
    %70 = arith.subf %68, %69 : vector<2x128xf32>
    %c0_17 = arith.constant 0 : index
    %c0_18 = arith.constant 0 : index
    %c0_19 = arith.constant 0 : index
    %c0_20 = arith.constant 0 : index
    %71 = vector.load %arg4[%c0_17, %c0_18, %c0_19, %c0_20] : memref<1x2x2x128xf32, #tpu.memory_space<vmem>>, vector<1x1x2x128xf32>
    %72 = vector.shape_cast %71 : vector<1x1x2x128xf32> to vector<2x128xf32>
    %73 = vector.shape_cast %70 : vector<2x128xf32> to vector<1x1x2x128xf32>
    tpu.vector_store %arg4[%c0_17, %c0_18, %c0_19, %c0_20], %73 {strides = array<i32>} : memref<1x2x2x128xf32, #tpu.memory_space<vmem>>, vector<1x1x2x128xf32>,
    %74 = arith.mulf %45, %67 : vector<2x128xf32>
    %cst_21 = arith.constant 1.000000e+00 : f32
    %75 = vector.broadcast %cst_21 : f32 to vector<2x128xf32>
    %76 = arith.subf %74, %75 : vector<2x128xf32>
    %c0_22 = arith.constant 0 : index
    %c1_23 = arith.constant 1 : index
    %c0_24 = arith.constant 0 : index
    %c0_25 = arith.constant 0 : index
    %77 = vector.load %arg4[%c0_22, %c1_23, %c0_24, %c0_25] : memref<1x2x2x128xf32, #tpu.memory_space<vmem>>, vector<1x1x2x128xf32>
    %78 = vector.shape_cast %77 : vector<1x1x2x128xf32> to vector<2x128xf32>
    %79 = vector.shape_cast %76 : vector<2x128xf32> to vector<1x1x2x128xf32>
    tpu.vector_store %arg4[%c0_22, %c1_23, %c0_24, %c0_25], %79 {strides = array<i32>} : memref<1x2x2x128xf32, #tpu.memory_space<vmem>>, vector<1x1x2x128xf32>,
    return
  }
  func.func @transform_0(%arg0: i32, %arg1: i32) -> (i32, i32) {
    %c0_i32 = arith.constant 0 : i32
    %c0_i32_0 = arith.constant 0 : i32
    %c0_i32_1 = arith.constant 0 : i32
    return %c0_i32, %c0_i32_0 : i32, i32
  }
  func.func @transform_1(%arg0: i32, %arg1: i32) -> (i32, i32, i32, i32) {
    %c0_i32 = arith.constant 0 : i32
    %c0_i32_0 = arith.constant 0 : i32
    %c0_i32_1 = arith.constant 0 : i32
    return %arg0, %c0_i32, %arg1, %c0_i32_0 : i32, i32, i32, i32
  }
  func.func @transform_2(%arg0: i32, %arg1: i32) -> (i32, i32, i32, i32) {
    %c0_i32 = arith.constant 0 : i32
    %c0_i32_0 = arith.constant 0 : i32
    %c0_i32_1 = arith.constant 0 : i32
    return %arg0, %c0_i32, %arg1, %c0_i32_0 : i32, i32, i32, i32
  }
}

</mosaic_0001>

<llo_original>
// kernel: tpu_custom_call.1
$region0: #{tpu_custom_call.1}
  #allocation0 [shape = 'u32[]', space=smem, size = 0x4, offset = 0x4, fixed_abs, tag = 'smem constant byte address 0x4 - core index']
  #allocation1 [shape = 'u32[72,128]{1,0:T(1,128)}', space=vmem, size = 0x9000, scoped, tag = 'internal scratch']
  %s0 = inlined_call_operand.hbm [shape: f32[2,12], index: 0, kind: input, shape index: {}]
  %s1 = inlined_call_operand.hbm [shape: f32[2,4,2,128], index: 1, kind: input, shape index: {}]
  %s2 = inlined_call_operand.hbm [shape: f32[2,2,2,128], index: 2, kind: output, shape index: {}]
  %s3 = sld [smem:[#allocation0]]
  $region49: #{tpu_custom_call.1} parent=0
    _
  %s5 = ssub.s32 1, %s3
  %s6 = scalar_select 0, %s5, %s3
  $region1: #{tpu_custom_call.1} parent=0
    #allocation2 [shape = 'u8[1024]{0}', space=smem, size = 0x400, scoped, tag = 'input window, operand 0, single buffered']
    #allocation3 [shape = 's32[2]{0}', space=sflag, size = 0x8, scoped, tag = 'scoped memory for tpu_custom_call.1']
    #allocation4 [shape = 's32[2]{0}', space=sflag, size = 0x8, scoped, tag = 'scoped memory for tpu_custom_call.1']
    #allocation5 [shape = 's32[2]{0}', space=sflag, size = 0x8, scoped, tag = 'scoped memory for tpu_custom_call.1']
    #allocation6 [shape = 'u8[8192]{0}', space=vmem, size = 0x2000, scoped, tag = 'input window, operand 1']
    #allocation7 [shape = 'u8[4096]{0}', space=vmem, size = 0x1000, scoped, tag = 'output window, operand 0']
    %7 = vsyncpa [#allocation5], 0
    %8 = vsyncpa [#allocation3], 0
    %s9 = scalar_lea.sflag [#allocation3], 1
    %10 = vsyncpa %s9, 0
    %11 = vsyncpa [#allocation4], 0
    %s12 = scalar_lea.sflag [#allocation4], 1
    %13 = vsyncpa %s12, 0
    loop: start=0, step=1, limit=4
    $region2: #{tpu_custom_call.1} parent=1 // loop_pre_header
      _
    $region3: #{tpu_custom_call.1} parent=1 // loop_header
      %s15 = sphi 0, %s19
      %p16 = scmp.ge.s32.totalorder %s15, 4
      %s22 = sphi 0, %s34
      %s23 = sphi 0, %s30
      %s24 = sphi 0, %s22
      %s25 = sphi 0, %s23
      %s26 = sphi 0, %s24
      %s27 = sphi 0, %s25
      %s35 = sphi 0, %s35
      %s37 = sphi 0, %s35
      %s38 = sphi 0, %s37
      %s52 = sphi 0, %s38
      %s60 = sphi 0, %s62
      %s63 = sphi 0, %s60
      %s64 = sphi 0, %s63
      %s80 = sphi 0, %s64
      %s88 = sphi 0, %s90
      %s91 = sphi 0, %s88
      %s92 = sphi 0, %s91
      %s108 = sphi 0, %s92
    $region4: #{tpu_custom_call.1} parent=1 // loop_header_branch
      %18 = sbr.rel (%p16) target = $region8
    $region5: #{tpu_custom_call.1} parent=1 // loop_body
      %s20 = ssub.s32 %s15, 1
      %s21 = ssub.s32 %s15, 2
      %s28 = sadd.s32 1, %s23
      %p29 = scmp.ge.s32.totalorder %s28, 1
      %s30 = scalar_select %p29, 0, %s28
      %s31 = sadd.s32 1, %s22
      %s32 = scalar_select %p29, %s31, %s22
      %p33 = scmp.ge.s32.totalorder %s32, 2
      %s34 = scalar_select %p33, 0, %s32
      %s36 = sadd.s32 %s35, 1
      %p39 = scmp.eq.s32.totalorder %s15, 1
      %p40 = scmp.ne.s32.totalorder %s35, %s37
      %p41 = scmp.eq.s32.totalorder %s15, 0
      %p42 = por %p40, %p41
      %p43 = scmp.ne.s32.totalorder %s35, %s37
      %p44 = scmp.eq.s32.totalorder %s20, 1
      %p45 = por %p43, %p44
      %p46 = scmp.ne.s32.totalorder %s37, %s38
      %p47 = scmp.eq.s32.totalorder %s20, 0
      %p48 = por %p46, %p47
      %p49 = scmp.ne.s32.totalorder %s37, %s38
      %p50 = scmp.eq.s32.totalorder %s21, 1
      %p51 = por %p49, %p50
      %p53 = scmp.ne.s32.totalorder %s38, %s52
      %p54 = scmp.eq.s32.totalorder %s21, 0
      %p55 = por %p53, %p54
      %s56 = ssub.s32 %s22, %s34
      %s57 = ssub.s32 %s23, %s30
      %s58 = sor.u32 %s56, %s57
      %p59 = scmp.eq.s32.totalorder %s58, 0
      %s61 = sadd.s32 %s60, 1
      %s62 = scalar_select %p59, %s60, %s61
      %p65 = pneg %p59
      %p66 = scmp.eq.s32.totalorder %s15, 1
      %p67 = por %p65, %p66
      %p68 = scmp.ne.s32.totalorder %s60, %s63
      %p69 = scmp.eq.s32.totalorder %s15, 0
      %p70 = por %p68, %p69
      %p71 = scmp.ne.s32.totalorder %s60, %s63
      %p72 = scmp.eq.s32.totalorder %s20, 1
      %p73 = por %p71, %p72
      %p74 = scmp.ne.s32.totalorder %s63, %s64
      %p75 = scmp.eq.s32.totalorder %s20, 0
      %p76 = por %p74, %p75
      %p77 = scmp.ne.s32.totalorder %s63, %s64
      %p78 = scmp.eq.s32.totalorder %s21, 1
      %p79 = por %p77, %p78
      %p81 = scmp.ne.s32.totalorder %s64, %s80
      %p82 = scmp.eq.s32.totalorder %s21, 0
      %p83 = por %p81, %p82
      %s84 = ssub.s32 %s22, %s34
      %s85 = ssub.s32 %s23, %s30
      %s86 = sor.u32 %s84, %s85
      %p87 = scmp.eq.s32.totalorder %s86, 0
      %s89 = sadd.s32 %s88, 1
      %s90 = scalar_select %p87, %s88, %s89
      %p93 = pneg %p87
      %p94 = scmp.eq.s32.totalorder %s15, 1
      %p95 = por %p93, %p94
      %p96 = scmp.ne.s32.totalorder %s88, %s91
      %p97 = scmp.eq.s32.totalorder %s15, 0
      %p98 = por %p96, %p97
      %p99 = scmp.ne.s32.totalorder %s88, %s91
      %p100 = scmp.eq.s32.totalorder %s20, 1
      %p101 = por %p99, %p100
      %p102 = scmp.ne.s32.totalorder %s91, %s92
      %p103 = scmp.eq.s32.totalorder %s20, 0
      %p104 = por %p102, %p103
      %p105 = scmp.ne.s32.totalorder %s91, %s92
      %p106 = scmp.eq.s32.totalorder %s21, 1
      %p107 = por %p105, %p106
      %p109 = scmp.ne.s32.totalorder %s92, %s108
      %p110 = scmp.eq.s32.totalorder %s21, 0
      %p111 = por %p109, %p110
      %p112 = scmp.le.s32.totalorder 1, %s15
      %p113 = scmp.lt.s32.totalorder %s15, 3
      %p114 = pnand %p112, %p113
      %p115 = pneg %p114
      // Predicated region
      $region9: #{tpu_custom_call.1} parent=5 // pred_check
        _
      $region10: #{tpu_custom_call.1} parent=5 // pred_check_branch
        %117 = sbr.rel (%p114) target = $region12
      $region11: #{tpu_custom_call.1} parent=5 // pred_region
        %s118 = ssub.s32 %s15, 1
        // Predicated region
        $region13: #{tpu_custom_call.1} parent=11 // pred_check
          %p119 = pneg %p48
        $region14: #{tpu_custom_call.1} parent=11 // pred_check_branch
          %121 = sbr.rel (%p119) target = $region16
        $region15: #{tpu_custom_call.1} parent=11 // pred_region
          %123 = vsyncadd [#allocation5], 0
          %s125 = sshll.u32 %s0, 4
          %s126 = int_to_ptr.hbm [resolvable:$true] %s125
          %128 = dma.hbm_to_smem %s126, 32, [#allocation2], [#allocation5]
        $region16: #{tpu_custom_call.1} parent=11 // pred_fallthru
          _
      $region12: #{tpu_custom_call.1} parent=5 // pred_fallthru
        _
      %p129 = scmp.lt.s32.totalorder %s15, 2
      // Predicated region
      $region17: #{tpu_custom_call.1} parent=5 // pred_check
        %p130 = pneg %p129
      $region18: #{tpu_custom_call.1} parent=5 // pred_check_branch
        %132 = sbr.rel (%p130) target = $region20
      $region19: #{tpu_custom_call.1} parent=5 // pred_region
        // Predicated region
        $region21: #{tpu_custom_call.1} parent=19 // pred_check
          %p133 = pneg %p70
        $region22: #{tpu_custom_call.1} parent=19 // pred_check_branch
          %135 = sbr.rel (%p133) target = $region24
        $region23: #{tpu_custom_call.1} parent=19 // pred_region
          %s136 = sand.u32 %s60, 1
          %s137 = scalar_lea.sflag [#allocation3], %s136
          %s138 = sand.u32 %s60, 1
          %s139 = smul.addr %s138, 8
          %s140 = scalar_lea.vmem [#allocation6], %s139
          %142 = vsyncadd %s137, 0
          %s143 = smul.addr %s22, 4
          %s144 = sadd.s32 %s23, %s143
          %s145 = smul.addr %s144, 2
          %s146 = scalar_lea.hbm %s1, %s145
          %s147 = sshll.u32 %s146, 4
          %s148 = int_to_ptr.hbm [resolvable:$true] %s147
          %s149 = sshll.u32 %s140, 4
          %s150 = int_to_ptr.vmem [resolvable:$true] %s149
          %155 = dma.hbm_to_vmem [thread:$0]  %s148, 128, %s150, %s137, 32, 32, 2
        $region24: #{tpu_custom_call.1} parent=19 // pred_fallthru
          _
      $region20: #{tpu_custom_call.1} parent=5 // pred_fallthru
        _
      %p156 = scmp.le.s32.totalorder 1, %s15
      %p157 = scmp.lt.s32.totalorder %s15, 3
      %p158 = pnand %p156, %p157
      %p159 = pneg %p158
      // Predicated region
      $region25: #{tpu_custom_call.1} parent=5 // pred_check
        _
      $region26: #{tpu_custom_call.1} parent=5 // pred_check_branch
        %161 = sbr.rel (%p158) target = $region28
      $region27: #{tpu_custom_call.1} parent=5 // pred_region
        %s162 = ssub.s32 %s15, 1
        // Predicated region
        $region29: #{tpu_custom_call.1} parent=27 // pred_check
          %p163 = pneg %p48
        $region30: #{tpu_custom_call.1} parent=27 // pred_check_branch
          %165 = sbr.rel (%p163) target = $region32
        $region31: #{tpu_custom_call.1} parent=27 // pred_region
          %167 = dma.done [#allocation5], 32
        $region32: #{tpu_custom_call.1} parent=27 // pred_fallthru
          _
        %s168 = sand.u32 %s63, 1
        %s169 = scalar_lea.sflag [#allocation3], %s168
        %s170 = sand.u32 %s63, 1
        %s171 = smul.addr %s170, 8
        %s172 = scalar_lea.vmem [#allocation6], %s171
        // Predicated region
        $region33: #{tpu_custom_call.1} parent=27 // pred_check
          %p173 = pneg %p76
        $region34: #{tpu_custom_call.1} parent=27 // pred_check_branch
          %175 = sbr.rel (%p173) target = $region36
        $region35: #{tpu_custom_call.1} parent=27 // pred_region
          %177 = dma.done %s169, 128
        $region36: #{tpu_custom_call.1} parent=27 // pred_fallthru
          _
        %178 = sfence
        %p179 = pneg %p48
        %p180 = pneg %p45
        %s181 = sand.u32 %s63, 1
        %s182 = scalar_lea.sflag [#allocation3], %s181
        %s183 = sand.u32 %s63, 1
        %s184 = smul.addr %s183, 8
        %s185 = scalar_lea.vmem [#allocation6], %s184
        %p186 = pneg %p76
        %p187 = pneg %p73
        %p188 = pneg %p104
        %p189 = pneg %p101
        %s190 = sand.u32 %s91, 1
        %s191 = scalar_lea.sflag [#allocation4], %s190
        %s192 = sand.u32 %s91, 1
        %s193 = smul.addr %s192, 4
        %s194 = scalar_lea.vmem [#allocation7], %s193
        %v195 = vld [vmem:[%s172] sm:$0x3]
        %s196 = scalar_lea.vmem %s172, 2 [#allocation6]
        %v197 = vld [vmem:[%s196] sm:$0x3]
        %s198 = scalar_lea.vmem %s172, 4 [#allocation6]
        %v199 = vld [vmem:[%s198] sm:$0x3]
        %s200 = scalar_lea.vmem %s172, 6 [#allocation6]
        %v201 = vld [vmem:[%s200] sm:$0x3]
        %s202 = smul.u32 %s24, 128
        %s203 = sld [smem:[#allocation2 + %s202]]
        %v204 = vstv %s203
        %v205 = vmul.f32 %v204, %v195
        %s206 = sadd.s32 %s202, 1
        %s207 = sld [smem:[#allocation2 + %s206]]
        %v208 = vstv %s207
        %v209 = vmul.f32 %v208, %v197
        %v210 = vadd.f32 %v205, %v209
        %s211 = sadd.s32 %s202, 2
        %s212 = sld [smem:[#allocation2 + %s211]]
        %v213 = vstv %s212
        %v214 = vmul.f32 %v213, %v199
        %v215 = vadd.f32 %v210, %v214
        %s216 = sadd.s32 %s202, 3
        %s217 = sld [smem:[#allocation2 + %s216]]
        %v218 = vstv %s217
        %v219 = vmul.f32 %v218, %v201
        %v220 = vadd.f32 %v215, %v219
        %s221 = sadd.s32 %s202, 4
        %s222 = sld [smem:[#allocation2 + %s221]]
        %v223 = vstv %s222
        %v224 = vmul.f32 %v223, %v195
        %s225 = sadd.s32 %s202, 5
        %s226 = sld [smem:[#allocation2 + %s225]]
        %v227 = vstv %s226
        %v228 = vmul.f32 %v227, %v197
        %v229 = vadd.f32 %v224, %v228
        %s230 = sadd.s32 %s202, 6
        %s231 = sld [smem:[#allocation2 + %s230]]
        %v232 = vstv %s231
        %v233 = vmul.f32 %v232, %v199
        %v234 = vadd.f32 %v229, %v233
        %s235 = sadd.s32 %s202, 7
        %s236 = sld [smem:[#allocation2 + %s235]]
        %v237 = vstv %s236
        %v238 = vmul.f32 %v237, %v201
        %v239 = vadd.f32 %v234, %v238
        %s240 = sadd.s32 %s202, 8
        %s241 = sld [smem:[#allocation2 + %s240]]
        %v242 = vstv %s241
        %v243 = vmul.f32 %v242, %v195
        %s244 = sadd.s32 %s202, 9
        %s245 = sld [smem:[#allocation2 + %s244]]
        %v246 = vstv %s245
        %v247 = vmul.f32 %v246, %v197
        %v248 = vadd.f32 %v243, %v247
        %s249 = sadd.s32 %s202, 10
        %s250 = sld [smem:[#allocation2 + %s249]]
        %v251 = vstv %s250
        %v252 = vmul.f32 %v251, %v199
        %v253 = vadd.f32 %v248, %v252
        %s254 = sadd.s32 %s202, 11
        %s255 = sld [smem:[#allocation2 + %s254]]
        %v256 = vstv %s255
        %v257 = vmul.f32 %v256, %v201
        %v258 = vadd.f32 %v253, %v257
        %v259 = vadd.f32 %v258, 1e-07
        %v260 = vrcp.pop %v259
        %v261 = vmul.f32 %v259, %v260
        %v262 = vsub.f32 1.0, %v261
        %v263 = vmul.f32 %v260, %v262
        %v264 = vadd.f32 %v260, %v263
        %vm265 = vweird.f32 %v259
        %vm266 = vweird.f32 %v260
        %vm267 = vmor %vm265, %vm266
        %v268 = vsel %vm267, %v260, %v264
        %v269 = vand.u32 2147483647, %v259
        %vm270 = vcmp.eq.f32.partialorder %v269, 8.507059e+37
        %v271 = vand.u32 %v259, 2147483648
        %v272 = vor.u32 1.1754944e-38, %v271
        %v273 = vsel %vm270, %v272, %v268
        %v274 = vmul.f32 %v220, %v273
        %v275 = vsub.f32 %v274, 1.0
        %276 = vst [vmem:[%s194] sm:$0x3] %v275
        %v277 = vmul.f32 %v239, %v273
        %v278 = vsub.f32 %v277, 1.0
        %s279 = scalar_lea.vmem %s194, 2 [#allocation7]
        %280 = vst [vmem:[%s279] sm:$0x3] %v278
        %s281 = sand.u32 %s91, 1
        %s282 = scalar_lea.sflag [#allocation4], %s281
        %s283 = sand.u32 %s91, 1
        %s284 = smul.addr %s283, 4
        %s285 = scalar_lea.vmem [#allocation7], %s284
        // Predicated region
        $region37: #{tpu_custom_call.1} parent=27 // pred_check
          %p286 = pneg %p101
        $region38: #{tpu_custom_call.1} parent=27 // pred_check_branch
          %288 = sbr.rel (%p286) target = $region40
        $region39: #{tpu_custom_call.1} parent=27 // pred_region
          %290 = vsyncadd %s282, 0
          %s291 = smul.addr %s24, 2
          %s292 = sadd.s32 %s25, %s291
          %s293 = smul.addr %s292, 2
          %s294 = scalar_lea.hbm %s2, %s293
          %s295 = sshll.u32 %s285, 4
          %s296 = int_to_ptr.vmem [resolvable:$true] %s295
          %s297 = sshll.u32 %s294, 4
          %s298 = int_to_ptr.hbm [resolvable:$true] %s297
          %303 = dma.vmem_to_hbm [thread:$0]  %s296, 64, %s298, %s282, 32, 32, 2
        $region40: #{tpu_custom_call.1} parent=27 // pred_fallthru
          _
      $region28: #{tpu_custom_call.1} parent=5 // pred_fallthru
        _
      %p304 = scmp.le.s32.totalorder 2, %s15
      // Predicated region
      $region41: #{tpu_custom_call.1} parent=5 // pred_check
        %p305 = pneg %p304
      $region42: #{tpu_custom_call.1} parent=5 // pred_check_branch
        %307 = sbr.rel (%p305) target = $region44
      $region43: #{tpu_custom_call.1} parent=5 // pred_region
        %s308 = ssub.s32 %s15, 2
        // Predicated region
        $region45: #{tpu_custom_call.1} parent=43 // pred_check
          %p309 = pneg %p107
        $region46: #{tpu_custom_call.1} parent=43 // pred_check_branch
          %311 = sbr.rel (%p309) target = $region48
        $region47: #{tpu_custom_call.1} parent=43 // pred_region
          %s312 = sand.u32 %s92, 1
          %s313 = scalar_lea.sflag [#allocation4], %s312
          %s314 = sand.u32 %s92, 1
          %s315 = smul.addr %s314, 4
          %s316 = scalar_lea.vmem [#allocation7], %s315
          %318 = dma.done %s313, 64
        $region48: #{tpu_custom_call.1} parent=43 // pred_fallthru
          _
      $region44: #{tpu_custom_call.1} parent=5 // pred_fallthru
        _
    $region6: #{tpu_custom_call.1} parent=1 // loop_footer
      %s19 = sadd.s32 1, %s15
    $region7: #{tpu_custom_call.1} parent=1 // loop_footer_branch
      %14 = sbr.rel target = $region3
    $region8: #{tpu_custom_call.1} parent=1 // loop_exit
      _
    %319 = vsyncpa [#allocation3], 1
    %s320 = scalar_lea.sflag [#allocation3], 1
    %321 = vsyncpa %s320, 1
    %322 = vsyncpa [#allocation4], 1
    %s323 = scalar_lea.sflag [#allocation4], 1
    %324 = vsyncpa %s323, 1
    %325 = vsyncpa [#allocation5], 1
    %s326 = scalar_lea.sflag [#allocation5], 1
    %327 = vsyncpa %s326, 1

</llo_original>
